<compile_context>
chip_gen: v6e
topology: v6e:2x2x1
jax: 0.10.0
libtpu: 0.0.40
codegen_flags: <defaults>
</compile_context>

<pallas_src>
import functools

import jax
import jax.numpy as jnp
from jax import lax
from jax.experimental import pallas as pl
from jax.experimental.pallas import tpu as pltpu

LEAKY_SLOPE = 0.01   # nn.LeakyReLU default
BN_EPS = 1e-5        # nn.BatchNorm2d default


def _predict_kernel(x_ref, w1_ref, shift_ref, mask_ref, w2_ref, b2_ref, o_ref, *, width):
    """One (batch, spatial-tile) grid step, channel-major layout.

    x_ref    : (1, 1, Cin, LT)  bf16  padded/flattened image slab (tile + halo + guards)
    w1_ref   : (9, C2, Cin)     bf16  3x3 conv taps, BN scale pre-folded
    shift_ref: (C2, 1)          f32   folded BatchNorm shift
    mask_ref : (2, T)           f32   [left, right] W-boundary masks
    w2_ref   : (Cout, C2)       bf16  1x1 conv weights
    b2_ref   : (Cout, 1)        f32   1x1 conv bias
    o_ref    : (1, Cout, T)     f32   lane-dense output tile
    """
    tile = o_ref.shape[-1]
    c2 = w1_ref.shape[1]

    xt = x_ref[0, 0]                       # (Cin, LT) bf16
    masks = mask_ref[...]                  # (2, T) f32
    mask_l = masks[0:1, :]                 # zero where w == 0
    mask_r = masks[1:2, :]                 # zero where w == W-1

    # 3x3 conv (+ folded BN scale) as 9 MXU dots on statically shifted lane slices.
    acc = jnp.zeros((c2, tile), jnp.float32)
    for dy in range(3):
        for dx in range(3):
            start = dy * width + dx                                   # static offset
            xs = xt[:, start:start + tile]                            # (Cin, T) bf16
            part = jnp.dot(w1_ref[3 * dy + dx], xs,
                           preferred_element_type=jnp.float32)        # (C2, T) f32
            if dx == 0:
                part = part * mask_l      # kill wrapped left-column values
            elif dx == 2:
                part = part * mask_r      # kill wrapped right-column values
            acc = acc + part

    y = acc + shift_ref[...]                                          # BN shift
    y = jnp.where(y > 0, y, LEAKY_SLOPE * y)                          # LeakyReLU
    z = jnp.dot(w2_ref[...], y.astype(w2_ref.dtype),
                preferred_element_type=jnp.float32)                   # 1x1 conv
    o_ref[0] = (z + b2_ref[...]).astype(o_ref.dtype)


def _pick_spatial_tile(hw, width):
    """Whole image if small; otherwise a lane-aligned divisor with a capped VMEM footprint."""
    if hw <= 2048:
        return hw
    for cand in (2048, 1024, 512, 256, 128):
        if hw % cand == 0 and cand % width == 0:
            return cand
    return hw


def predict_forward(x_nchw, params, num_classes):
    """Pallas implementation of predict.forward (eval mode). x_nchw: (N, Cin, H, W) f32."""
    w1, gamma, beta, rmean, rvar, w2, b2 = params
    n, cin, h, w = x_nchw.shape
    c2 = w1.shape[0]                  # in_channels * 2
    cout = w2.shape[0]                # (num_classes + 5) * 3
    hw = h * w

    tile = _pick_spatial_tile(hw, w)
    assert hw % tile == 0 and tile % w == 0
    n_tiles = hw // tile

    # ---- fold BatchNorm (running stats) into conv1; prepack weights (trace time) ----
    scale = gamma / jnp.sqrt(rvar + BN_EPS)                             # (C2,)
    shift = (beta - rmean * scale).reshape(c2, 1).astype(jnp.float32)
    w1s = w1 * scale[:, None, None, None]                               # conv1 has no bias
    w1taps = jnp.transpose(w1s, (2, 3, 0, 1)).reshape(9, c2, cin).astype(jnp.bfloat16)
    w2t = w2[:, :, 0, 0].astype(jnp.bfloat16)                           # (Cout, C2)
    b2c = b2.reshape(cout, 1).astype(jnp.float32)

    # ---- padded flat slab (replaces the 9x im2col HBM tensor) ----
    # Pad H by 1 on each side, flatten spatial, add a 1-elem guard and lane padding.
    xp = jnp.pad(x_nchw, ((0, 0), (0, 0), (1, 1), (0, 0)))              # (N, Cin, H+2, W)
    xflat = xp.reshape(n, cin, (h + 2) * w)
    lt = tile + 2 * w + 2                                               # tile + shift halo
    lt_pad = ((lt + 127) // 128) * 128                                  # lane-aligned slab
    total = (n_tiles - 1) * tile + lt_pad
    xg = jnp.pad(xflat, ((0, 0), (0, 0), (1, total - ((h + 2) * w + 1))))
    xtiles = jnp.stack(
        [xg[:, :, t * tile: t * tile + lt_pad] for t in range(n_tiles)],
        axis=1).astype(jnp.bfloat16)                                    # (N, n_tiles, Cin, LT)

    # Lane masks zeroing the W-boundary wraparound of the flattened-row shifts.
    q = jnp.arange(tile) % w
    masks = jnp.stack([(q != 0), (q != w - 1)]).astype(jnp.float32)     # (2, T)

    kernel = functools.partial(_predict_kernel, width=w)
    out = pl.pallas_call(
        kernel,
        out_shape=jax.ShapeDtypeStruct((n, cout, hw), jnp.float32),
        grid=(n, n_tiles),
        in_specs=[
            pl.BlockSpec((1, 1, cin, lt_pad), lambda i, t: (i, t, 0, 0)),
            # constant index maps -> fetched once, stay resident across steps
            pl.BlockSpec((9, c2, cin), lambda i, t: (0, 0, 0)),
            pl.BlockSpec((c2, 1), lambda i, t: (0, 0)),
            pl.BlockSpec((2, tile), lambda i, t: (0, 0)),
            pl.BlockSpec((cout, c2), lambda i, t: (0, 0)),
            pl.BlockSpec((cout, 1), lambda i, t: (0, 0)),
        ],
        out_specs=pl.BlockSpec((1, cout, tile), lambda i, t: (i, 0, t)),
        compiler_params=pltpu.CompilerParams(
            dimension_semantics=("parallel", "parallel"),
            vmem_limit_bytes=32 * 1024 * 1024,
        ),
    )(xtiles, w1taps, shift, masks, w2t, b2c)

    # Output is already channel-major (N, Cout, H*W); the final reshape/permute
    # is exactly PyTorch's reshape(N, 3, nc+5, H, W).permute(0, 1, 3, 4, 2).
    out5 = out.reshape(n, 3, num_classes + 5, h, w)
    return jnp.transpose(out5, (0, 1, 3, 4, 2))


def ref_forward(x_nchw, params, num_classes, conv_dtype=jnp.float32):
    """Pure-JAX reference (PyTorch forward in eval mode).

    conv_dtype=jnp.bfloat16 gives a precision-matched reference for the bf16 kernel
    (bf16 operands, f32 accumulation)."""
    w1, gamma, beta, rmean, rvar, w2, b2 = params
    scale = gamma / jnp.sqrt(rvar + BN_EPS)
    shift = beta - rmean * scale
    w1s = (w1 * scale[:, None, None, None]).astype(conv_dtype)
    y = lax.conv_general_dilated(
        x_nchw.astype(conv_dtype), w1s, (1, 1), ((1, 1), (1, 1)),
        dimension_numbers=("NCHW", "OIHW", "NCHW"),
        preferred_element_type=jnp.float32)
    y = y + shift[None, :, None, None]
    y = jnp.where(y > 0, y, LEAKY_SLOPE * y)
    z = lax.conv_general_dilated(
        y.astype(conv_dtype), w2.astype(conv_dtype), (1, 1), "VALID",
        dimension_numbers=("NCHW", "OIHW", "NCHW"),
        preferred_element_type=jnp.float32)
    z = z + b2[None, :, None, None]
    nb, cout, hh, ww = z.shape
    return jnp.transpose(z.reshape(nb, 3, num_classes + 5, hh, ww), (0, 1, 3, 4, 2))


def init_params(key, in_channels, num_classes):
    c2 = in_channels * 2
    cout = (num_classes + 5) * 3
    k = jax.random.split(key, 7)
    w1 = jax.random.normal(k[0], (c2, in_channels, 3, 3), jnp.float32) * 0.1
    gamma = 0.5 + jax.random.uniform(k[1], (c2,), jnp.float32)
    beta = jax.random.normal(k[2], (c2,), jnp.float32) * 0.1
    rmean = jax.random.normal(k[3], (c2,), jnp.float32) * 0.1
    rvar = 0.5 + jax.random.uniform(k[4], (c2,), jnp.float32)
    w2 = jax.random.normal(k[5], (cout, c2, 1, 1), jnp.float32) * 0.1
    b2 = jax.random.normal(k[6], (cout,), jnp.float32) * 0.1
    return (w1, gamma, beta, rmean, rvar, w2, b2)


if __name__ == "__main__":
    key = jax.random.PRNGKey(0)
    k_x, k_p = jax.random.split(key)

    N, Cin, H, W = 2, 4, 16, 16
    num_classes = 3

    x = jax.random.normal(k_x, (N, Cin, H, W), jnp.float32)
    params = init_params(k_p, Cin, num_classes)

    out = jax.block_until_ready(predict_forward(x, params, num_classes))
    assert out.shape == (N, 3, H, W, num_classes + 5), out.shape

    # Tight check vs a precision-matched (bf16 operands, f32 accumulation) reference.
    ref_m = jax.block_until_ready(ref_forward(x, params, num_classes, jnp.bfloat16))
    err_m = float(jnp.max(jnp.abs(out - ref_m)))
    assert jnp.allclose(out, ref_m, atol=1e-2, rtol=1e-2), err_m

    # Loose check vs the full-f32 reference (tolerance accounts for bf16 operand rounding).
    ref_f = jax.block_until_ready(ref_forward(x, params, num_classes))
    err_f = float(jnp.max(jnp.abs(out - ref_f)))
    assert jnp.allclose(out, ref_f, atol=5e-2, rtol=5e-2), err_f

    print("KERNEL_OK")
</pallas_src>

<mosaic_0001>
module attributes {stable_mosaic.version = 11 : i64} {
  func.func @_predict_kernel(%arg0: i32, %arg1: i32, %arg2: memref<1x1x4x384xbf16, #tpu.memory_space<vmem>>, %arg3: memref<9x8x4xbf16, #tpu.memory_space<vmem>>, %arg4: memref<8x1xf32, #tpu.memory_space<vmem>>, %arg5: memref<2x256xf32, #tpu.memory_space<vmem>>, %arg6: memref<24x8xbf16, #tpu.memory_space<vmem>>, %arg7: memref<24x1xf32, #tpu.memory_space<vmem>>, %arg8: memref<1x24x256xf32, #tpu.memory_space<vmem>>) attributes {dimension_semantics = [#tpu.dimension_semantics<parallel>, #tpu.dimension_semantics<parallel>], iteration_bounds = array<i64: 2, 1>, scalar_prefetch = 0 : i64, scratch_operands = 0 : i64, tpu.core_type = #tpu.core_type<tc>, window_params = [{transform_indices = @transform_0, window_bounds = array<i64: 1, 1, 4, 384>}, {pipeline_mode = #tpu.pipeline_mode<synchronous>, transform_indices = @transform_1, window_bounds = array<i64: 9, 8, 4>}, {pipeline_mode = #tpu.pipeline_mode<synchronous>, transform_indices = @transform_2, window_bounds = array<i64: 8, 1>}, {pipeline_mode = #tpu.pipeline_mode<synchronous>, transform_indices = @transform_3, window_bounds = array<i64: 2, 256>}, {pipeline_mode = #tpu.pipeline_mode<synchronous>, transform_indices = @transform_4, window_bounds = array<i64: 24, 8>}, {pipeline_mode = #tpu.pipeline_mode<synchronous>, transform_indices = @transform_5, window_bounds = array<i64: 24, 1>}, {transform_indices = @transform_6, window_bounds = array<i64: 1, 24, 256>}]} {
    %c0 = arith.constant 0 : index
    %c0_0 = arith.constant 0 : index
    %c0_1 = arith.constant 0 : index
    %c0_2 = arith.constant 0 : index
    %0 = vector.load %arg2[%c0, %c0_0, %c0_1, %c0_2] : memref<1x1x4x384xbf16, #tpu.memory_space<vmem>>, vector<1x1x4x384xbf16>
    %1 = vector.shape_cast %0 : vector<1x1x4x384xbf16> to vector<4x384xbf16>
    %c0_3 = arith.constant 0 : index
    %c0_4 = arith.constant 0 : index
    %2 = vector.load %arg5[%c0_3, %c0_4] : memref<2x256xf32, #tpu.memory_space<vmem>>, vector<2x256xf32>
    %3 = vector.extract_strided_slice %2 {offsets = [0, 0], sizes = [1, 256], strides = [1, 1]} : vector<2x256xf32> to vector<1x256xf32>
    %4 = vector.extract_strided_slice %2 {offsets = [1, 0], sizes = [1, 256], strides = [1, 1]} : vector<2x256xf32> to vector<1x256xf32>
    %cst = arith.constant 0.000000e+00 : f32
    %5 = vector.broadcast %cst : f32 to vector<8x256xf32>
    %6 = vector.extract_strided_slice %1 {offsets = [0, 0], sizes = [4, 256], strides = [1, 1]} : vector<4x384xbf16> to vector<4x256xbf16>
    %c0_5 = arith.constant 0 : index
    %c0_6 = arith.constant 0 : index
    %c0_7 = arith.constant 0 : index
    %7 = vector.load %arg3[%c0_5, %c0_6, %c0_7] : memref<9x8x4xbf16, #tpu.memory_space<vmem>>, vector<1x8x4xbf16>
    %8 = vector.shape_cast %7 : vector<1x8x4xbf16> to vector<8x4xbf16>
    %cst_8 = arith.constant dense<0.000000e+00> : vector<8x256xf32>
    %9 = tpu.matmul %8, %6, %cst_8 {dimension_numbers = #tpu.dot_dimension_numbers<[1], [0], [0], [1], [0, 0, 1, 1], [], []>} : vector<8x4xbf16>, vector<4x256xbf16>, vector<8x256xf32> -> vector<8x256xf32>
    %10 = vector.broadcast %3 : vector<1x256xf32> to vector<8x256xf32>
    %11 = arith.mulf %9, %10 : vector<8x256xf32>
    %12 = arith.addf %5, %11 : vector<8x256xf32>
    %13 = vector.extract_strided_slice %1 {offsets = [0, 1], sizes = [4, 256], strides = [1, 1]} : vector<4x384xbf16> to vector<4x256xbf16>
    %c1 = arith.constant 1 : index
    %c0_9 = arith.constant 0 : index
    %c0_10 = arith.constant 0 : index
    %14 = vector.load %arg3[%c1, %c0_9, %c0_10] : memref<9x8x4xbf16, #tpu.memory_space<vmem>>, vector<1x8x4xbf16>
    %15 = vector.shape_cast %14 : vector<1x8x4xbf16> to vector<8x4xbf16>
    %cst_11 = arith.constant dense<0.000000e+00> : vector<8x256xf32>
    %16 = tpu.matmul %15, %13, %cst_11 {dimension_numbers = #tpu.dot_dimension_numbers<[1], [0], [0], [1], [0, 0, 1, 1], [], []>} : vector<8x4xbf16>, vector<4x256xbf16>, vector<8x256xf32> -> vector<8x256xf32>
    %17 = arith.addf %12, %16 : vector<8x256xf32>
    %18 = vector.extract_strided_slice %1 {offsets = [0, 2], sizes = [4, 256], strides = [1, 1]} : vector<4x384xbf16> to vector<4x256xbf16>
    %c2 = arith.constant 2 : index
    %c0_12 = arith.constant 0 : index
    %c0_13 = arith.constant 0 : index
    %19 = vector.load %arg3[%c2, %c0_12, %c0_13] : memref<9x8x4xbf16, #tpu.memory_space<vmem>>, vector<1x8x4xbf16>
    %20 = vector.shape_cast %19 : vector<1x8x4xbf16> to vector<8x4xbf16>
    %cst_14 = arith.constant dense<0.000000e+00> : vector<8x256xf32>
    %21 = tpu.matmul %20, %18, %cst_14 {dimension_numbers = #tpu.dot_dimension_numbers<[1], [0], [0], [1], [0, 0, 1, 1], [], []>} : vector<8x4xbf16>, vector<4x256xbf16>, vector<8x256xf32> -> vector<8x256xf32>
    %22 = vector.broadcast %4 : vector<1x256xf32> to vector<8x256xf32>
    %23 = arith.mulf %21, %22 : vector<8x256xf32>
    %24 = arith.addf %17, %23 : vector<8x256xf32>
    %25 = vector.extract_strided_slice %1 {offsets = [0, 16], sizes = [4, 256], strides = [1, 1]} : vector<4x384xbf16> to vector<4x256xbf16>
    %c3 = arith.constant 3 : index
    %c0_15 = arith.constant 0 : index
    %c0_16 = arith.constant 0 : index
    %26 = vector.load %arg3[%c3, %c0_15, %c0_16] : memref<9x8x4xbf16, #tpu.memory_space<vmem>>, vector<1x8x4xbf16>
    %27 = vector.shape_cast %26 : vector<1x8x4xbf16> to vector<8x4xbf16>
    %cst_17 = arith.constant dense<0.000000e+00> : vector<8x256xf32>
    %28 = tpu.matmul %27, %25, %cst_17 {dimension_numbers = #tpu.dot_dimension_numbers<[1], [0], [0], [1], [0, 0, 1, 1], [], []>} : vector<8x4xbf16>, vector<4x256xbf16>, vector<8x256xf32> -> vector<8x256xf32>
    %29 = vector.broadcast %3 : vector<1x256xf32> to vector<8x256xf32>
    %30 = arith.mulf %28, %29 : vector<8x256xf32>
    %31 = arith.addf %24, %30 : vector<8x256xf32>
    %32 = vector.extract_strided_slice %1 {offsets = [0, 17], sizes = [4, 256], strides = [1, 1]} : vector<4x384xbf16> to vector<4x256xbf16>
    %c4 = arith.constant 4 : index
    %c0_18 = arith.constant 0 : index
    %c0_19 = arith.constant 0 : index
    %33 = vector.load %arg3[%c4, %c0_18, %c0_19] : memref<9x8x4xbf16, #tpu.memory_space<vmem>>, vector<1x8x4xbf16>
    %34 = vector.shape_cast %33 : vector<1x8x4xbf16> to vector<8x4xbf16>
    %cst_20 = arith.constant dense<0.000000e+00> : vector<8x256xf32>
    %35 = tpu.matmul %34, %32, %cst_20 {dimension_numbers = #tpu.dot_dimension_numbers<[1], [0], [0], [1], [0, 0, 1, 1], [], []>} : vector<8x4xbf16>, vector<4x256xbf16>, vector<8x256xf32> -> vector<8x256xf32>
    %36 = arith.addf %31, %35 : vector<8x256xf32>
    %37 = vector.extract_strided_slice %1 {offsets = [0, 18], sizes = [4, 256], strides = [1, 1]} : vector<4x384xbf16> to vector<4x256xbf16>
    %c5 = arith.constant 5 : index
    %c0_21 = arith.constant 0 : index
    %c0_22 = arith.constant 0 : index
    %38 = vector.load %arg3[%c5, %c0_21, %c0_22] : memref<9x8x4xbf16, #tpu.memory_space<vmem>>, vector<1x8x4xbf16>
    %39 = vector.shape_cast %38 : vector<1x8x4xbf16> to vector<8x4xbf16>
    %cst_23 = arith.constant dense<0.000000e+00> : vector<8x256xf32>
    %40 = tpu.matmul %39, %37, %cst_23 {dimension_numbers = #tpu.dot_dimension_numbers<[1], [0], [0], [1], [0, 0, 1, 1], [], []>} : vector<8x4xbf16>, vector<4x256xbf16>, vector<8x256xf32> -> vector<8x256xf32>
    %41 = vector.broadcast %4 : vector<1x256xf32> to vector<8x256xf32>
    %42 = arith.mulf %40, %41 : vector<8x256xf32>
    %43 = arith.addf %36, %42 : vector<8x256xf32>
    %44 = vector.extract_strided_slice %1 {offsets = [0, 32], sizes = [4, 256], strides = [1, 1]} : vector<4x384xbf16> to vector<4x256xbf16>
    %c6 = arith.constant 6 : index
    %c0_24 = arith.constant 0 : index
    %c0_25 = arith.constant 0 : index
    %45 = vector.load %arg3[%c6, %c0_24, %c0_25] : memref<9x8x4xbf16, #tpu.memory_space<vmem>>, vector<1x8x4xbf16>
    %46 = vector.shape_cast %45 : vector<1x8x4xbf16> to vector<8x4xbf16>
    %cst_26 = arith.constant dense<0.000000e+00> : vector<8x256xf32>
    %47 = tpu.matmul %46, %44, %cst_26 {dimension_numbers = #tpu.dot_dimension_numbers<[1], [0], [0], [1], [0, 0, 1, 1], [], []>} : vector<8x4xbf16>, vector<4x256xbf16>, vector<8x256xf32> -> vector<8x256xf32>
    %48 = vector.broadcast %3 : vector<1x256xf32> to vector<8x256xf32>
    %49 = arith.mulf %47, %48 : vector<8x256xf32>
    %50 = arith.addf %43, %49 : vector<8x256xf32>
    %51 = vector.extract_strided_slice %1 {offsets = [0, 33], sizes = [4, 256], strides = [1, 1]} : vector<4x384xbf16> to vector<4x256xbf16>
    %c7 = arith.constant 7 : index
    %c0_27 = arith.constant 0 : index
    %c0_28 = arith.constant 0 : index
    %52 = vector.load %arg3[%c7, %c0_27, %c0_28] : memref<9x8x4xbf16, #tpu.memory_space<vmem>>, vector<1x8x4xbf16>
    %53 = vector.shape_cast %52 : vector<1x8x4xbf16> to vector<8x4xbf16>
    %cst_29 = arith.constant dense<0.000000e+00> : vector<8x256xf32>
    %54 = tpu.matmul %53, %51, %cst_29 {dimension_numbers = #tpu.dot_dimension_numbers<[1], [0], [0], [1], [0, 0, 1, 1], [], []>} : vector<8x4xbf16>, vector<4x256xbf16>, vector<8x256xf32> -> vector<8x256xf32>
    %55 = arith.addf %50, %54 : vector<8x256xf32>
    %56 = vector.extract_strided_slice %1 {offsets = [0, 34], sizes = [4, 256], strides = [1, 1]} : vector<4x384xbf16> to vector<4x256xbf16>
    %c8 = arith.constant 8 : index
    %c0_30 = arith.constant 0 : index
    %c0_31 = arith.constant 0 : index
    %57 = vector.load %arg3[%c8, %c0_30, %c0_31] : memref<9x8x4xbf16, #tpu.memory_space<vmem>>, vector<1x8x4xbf16>
    %58 = vector.shape_cast %57 : vector<1x8x4xbf16> to vector<8x4xbf16>
    %cst_32 = arith.constant dense<0.000000e+00> : vector<8x256xf32>
    %59 = tpu.matmul %58, %56, %cst_32 {dimension_numbers = #tpu.dot_dimension_numbers<[1], [0], [0], [1], [0, 0, 1, 1], [], []>} : vector<8x4xbf16>, vector<4x256xbf16>, vector<8x256xf32> -> vector<8x256xf32>
    %60 = vector.broadcast %4 : vector<1x256xf32> to vector<8x256xf32>
    %61 = arith.mulf %59, %60 : vector<8x256xf32>
    %62 = arith.addf %55, %61 : vector<8x256xf32>
    %c0_33 = arith.constant 0 : index
    %c0_34 = arith.constant 0 : index
    %63 = vector.load %arg4[%c0_33, %c0_34] : memref<8x1xf32, #tpu.memory_space<vmem>>, vector<8x1xf32>
    %64 = vector.broadcast %63 : vector<8x1xf32> to vector<8x256xf32>
    %65 = arith.addf %62, %64 : vector<8x256xf32>
    %cst_35 = arith.constant 0.000000e+00 : f32
    %66 = vector.broadcast %cst_35 : f32 to vector<8x256xf32>
    %67 = arith.cmpf ogt, %65, %66 : vector<8x256xf32>
    %cst_36 = arith.constant 0.00999999977 : f32
    %68 = vector.broadcast %cst_36 : f32 to vector<8x256xf32>
    %69 = arith.mulf %68, %65 : vector<8x256xf32>
    %70 = arith.select %67, %65, %69 : vector<8x256xi1>, vector<8x256xf32>
    %c0_37 = arith.constant 0 : index
    %c0_38 = arith.constant 0 : index
    %71 = vector.load %arg6[%c0_37, %c0_38] : memref<24x8xbf16, #tpu.memory_space<vmem>>, vector<24x8xbf16>
    %72 = arith.truncf %70 : vector<8x256xf32> to vector<8x256xbf16>
    %cst_39 = arith.constant dense<0.000000e+00> : vector<24x256xf32>
    %73 = tpu.matmul %71, %72, %cst_39 {dimension_numbers = #tpu.dot_dimension_numbers<[1], [0], [0], [1], [0, 0, 1, 1], [], []>} : vector<24x8xbf16>, vector<8x256xbf16>, vector<24x256xf32> -> vector<24x256xf32>
    %c0_40 = arith.constant 0 : index
    %c0_41 = arith.constant 0 : index
    %74 = vector.load %arg7[%c0_40, %c0_41] : memref<24x1xf32, #tpu.memory_space<vmem>>, vector<24x1xf32>
    %75 = vector.broadcast %74 : vector<24x1xf32> to vector<24x256xf32>
    %76 = arith.addf %73, %75 : vector<24x256xf32>
    %c0_42 = arith.constant 0 : index
    %c0_43 = arith.constant 0 : index
    %c0_44 = arith.constant 0 : index
    %77 = vector.load %arg8[%c0_42, %c0_43, %c0_44] : memref<1x24x256xf32, #tpu.memory_space<vmem>>, vector<1x24x256xf32>
    %78 = vector.shape_cast %77 : vector<1x24x256xf32> to vector<24x256xf32>
    %79 = vector.shape_cast %76 : vector<24x256xf32> to vector<1x24x256xf32>
    tpu.vector_store %arg8[%c0_42, %c0_43, %c0_44], %79 {strides = array<i32>} : memref<1x24x256xf32, #tpu.memory_space<vmem>>, vector<1x24x256xf32>,
    return
  }
  func.func @transform_0(%arg0: i32, %arg1: i32) -> (i32, i32, i32, i32) {
    %c0_i32 = arith.constant 0 : i32
    %c0_i32_0 = arith.constant 0 : i32
    %c0_i32_1 = arith.constant 0 : i32
    return %arg0, %arg1, %c0_i32, %c0_i32_0 : i32, i32, i32, i32
  }
  func.func @transform_1(%arg0: i32, %arg1: i32) -> (i32, i32, i32) {
    %c0_i32 = arith.constant 0 : i32
    %c0_i32_0 = arith.constant 0 : i32
    %c0_i32_1 = arith.constant 0 : i32
    %c0_i32_2 = arith.constant 0 : i32
    return %c0_i32, %c0_i32_0, %c0_i32_1 : i32, i32, i32
  }
  func.func @transform_2(%arg0: i32, %arg1: i32) -> (i32, i32) {
    %c0_i32 = arith.constant 0 : i32
    %c0_i32_0 = arith.constant 0 : i32
    %c0_i32_1 = arith.constant 0 : i32
    return %c0_i32, %c0_i32_0 : i32, i32
  }
  func.func @transform_3(%arg0: i32, %arg1: i32) -> (i32, i32) {
    %c0_i32 = arith.constant 0 : i32
    %c0_i32_0 = arith.constant 0 : i32
    %c0_i32_1 = arith.constant 0 : i32
    return %c0_i32, %c0_i32_0 : i32, i32
  }
  func.func @transform_4(%arg0: i32, %arg1: i32) -> (i32, i32) {
    %c0_i32 = arith.constant 0 : i32
    %c0_i32_0 = arith.constant 0 : i32
    %c0_i32_1 = arith.constant 0 : i32
    return %c0_i32, %c0_i32_0 : i32, i32
  }
  func.func @transform_5(%arg0: i32, %arg1: i32) -> (i32, i32) {
    %c0_i32 = arith.constant 0 : i32
    %c0_i32_0 = arith.constant 0 : i32
    %c0_i32_1 = arith.constant 0 : i32
    return %c0_i32, %c0_i32_0 : i32, i32
  }
  func.func @transform_6(%arg0: i32, %arg1: i32) -> (i32, i32, i32) {
    %c0_i32 = arith.constant 0 : i32
    %c0_i32_0 = arith.constant 0 : i32
    return %arg0, %c0_i32, %arg1 : i32, i32, i32
  }
}

</mosaic_0001>

<llo_original>
// kernel: tpu_custom_call.1
$region0: #{tpu_custom_call.1}
  #allocation0 [shape = 'u32[]', space=smem, size = 0x4, offset = 0x4, fixed_abs, tag = 'smem constant byte address 0x4 - core index']
  #allocation1 [shape = 'u32[144,128]{1,0:T(1,128)}', space=vmem, size = 0x12000, scoped, tag = 'internal scratch']
  %s0 = inlined_call_operand.vmem [shape: bf16[2,1,4,384], index: 0, kind: input, shape index: {}]
  %s1 = inlined_call_operand.vmem [shape: bf16[9,8,4], index: 1, kind: input, shape index: {}]
  %s2 = inlined_call_operand.vmem [shape: f32[8,1], index: 2, kind: input, shape index: {}]
  %s3 = inlined_call_operand.vmem [shape: f32[2,256], index: 3, kind: input, shape index: {}]
  %s4 = inlined_call_operand.vmem [shape: bf16[24,8], index: 4, kind: input, shape index: {}]
  %s5 = inlined_call_operand.vmem [shape: f32[24,1], index: 5, kind: input, shape index: {}]
  %s6 = inlined_call_operand.hbm [shape: f32[2,24,256], index: 6, kind: output, shape index: {}]
  %s7 = sld [smem:[#allocation0]]
  $region57: #{tpu_custom_call.1} parent=0
    _
  %s9 = ssub.s32 1, %s7
  %s10 = scalar_select 0, %s9, %s7
  $region1: #{tpu_custom_call.1} parent=0
    #allocation2 [shape = 'u8[49152]{0}', space=vmem, size = 0xc000, scoped, tag = 'output window, operand 0']
    #allocation3 [shape = 's32[2]{0}', space=sflag, size = 0x8, scoped, tag = 'scoped memory for tpu_custom_call.1']
    %11 = vsyncpa [#allocation3], 0
    %s12 = scalar_lea.sflag [#allocation3], 1
    %13 = vsyncpa %s12, 0
    loop: start=0, step=1, limit=4
    $region2: #{tpu_custom_call.1} parent=1 // loop_pre_header
      _
    $region3: #{tpu_custom_call.1} parent=1 // loop_header
      %s15 = sphi 0, %s19
      %p16 = scmp.ge.s32.totalorder %s15, 4
      %s22 = sphi 0, %s34
      %s23 = sphi 0, %s30
      %s24 = sphi 0, %s22
      %s25 = sphi 0, %s23
      %s26 = sphi 0, %s24
      %s27 = sphi 0, %s25
      %s39 = sphi 0, %s41
      %s42 = sphi 0, %s39
      %s43 = sphi 0, %s42
      %s59 = sphi 0, %s43
      %s63 = sphi 0, %s63
      %s65 = sphi 0, %s63
      %s66 = sphi 0, %s65
      %s80 = sphi 0, %s66
      %s84 = sphi 0, %s84
      %s86 = sphi 0, %s84
      %s87 = sphi 0, %s86
      %s101 = sphi 0, %s87
      %s105 = sphi 0, %s105
      %s107 = sphi 0, %s105
      %s108 = sphi 0, %s107
      %s122 = sphi 0, %s108
      %s126 = sphi 0, %s126
      %s128 = sphi 0, %s126
      %s129 = sphi 0, %s128
      %s143 = sphi 0, %s129
      %s147 = sphi 0, %s147
      %s149 = sphi 0, %s147
      %s150 = sphi 0, %s149
      %s164 = sphi 0, %s150
      %s172 = sphi 0, %s174
      %s175 = sphi 0, %s172
      %s176 = sphi 0, %s175
      %s192 = sphi 0, %s176
    $region4: #{tpu_custom_call.1} parent=1 // loop_header_branch
      %18 = sbr.rel (%p16) target = $region8
    $region5: #{tpu_custom_call.1} parent=1 // loop_body
      %s20 = ssub.s32 %s15, 1
      %s21 = ssub.s32 %s15, 2
      %s28 = sadd.s32 1, %s23
      %p29 = scmp.ge.s32.totalorder %s28, 1
      %s30 = scalar_select %p29, 0, %s28
      %s31 = sadd.s32 1, %s22
      %s32 = scalar_select %p29, %s31, %s22
      %p33 = scmp.ge.s32.totalorder %s32, 2
      %s34 = scalar_select %p33, 0, %s32
      %s35 = ssub.s32 %s22, %s34
      %s36 = ssub.s32 %s23, %s30
      %s37 = sor.u32 %s35, %s36
      %p38 = scmp.eq.s32.totalorder %s37, 0
      %s40 = sadd.s32 %s39, 1
      %s41 = scalar_select %p38, %s39, %s40
      %p44 = pneg %p38
      %p45 = scmp.eq.s32.totalorder %s15, 1
      %p46 = por %p44, %p45
      %p47 = scmp.ne.s32.totalorder %s39, %s42
      %p48 = scmp.eq.s32.totalorder %s15, 0
      %p49 = por %p47, %p48
      %p50 = scmp.ne.s32.totalorder %s39, %s42
      %p51 = scmp.eq.s32.totalorder %s20, 1
      %p52 = por %p50, %p51
      %p53 = scmp.ne.s32.totalorder %s42, %s43
      %p54 = scmp.eq.s32.totalorder %s20, 0
      %p55 = por %p53, %p54
      %p56 = scmp.ne.s32.totalorder %s42, %s43
      %p57 = scmp.eq.s32.totalorder %s21, 1
      %p58 = por %p56, %p57
      %p60 = scmp.ne.s32.totalorder %s43, %s59
      %p61 = scmp.eq.s32.totalorder %s21, 0
      %p62 = por %p60, %p61
      %s64 = sadd.s32 %s63, 1
      %p67 = scmp.eq.s32.totalorder %s15, 1
      %p68 = scmp.ne.s32.totalorder %s63, %s65
      %p69 = scmp.eq.s32.totalorder %s15, 0
      %p70 = por %p68, %p69
      %p71 = scmp.ne.s32.totalorder %s63, %s65
      %p72 = scmp.eq.s32.totalorder %s20, 1
      %p73 = por %p71, %p72
      %p74 = scmp.ne.s32.totalorder %s65, %s66
      %p75 = scmp.eq.s32.totalorder %s20, 0
      %p76 = por %p74, %p75
      %p77 = scmp.ne.s32.totalorder %s65, %s66
      %p78 = scmp.eq.s32.totalorder %s21, 1
      %p79 = por %p77, %p78
      %p81 = scmp.ne.s32.totalorder %s66, %s80
      %p82 = scmp.eq.s32.totalorder %s21, 0
      %p83 = por %p81, %p82
      %s85 = sadd.s32 %s84, 1
      %p88 = scmp.eq.s32.totalorder %s15, 1
      %p89 = scmp.ne.s32.totalorder %s84, %s86
      %p90 = scmp.eq.s32.totalorder %s15, 0
      %p91 = por %p89, %p90
      %p92 = scmp.ne.s32.totalorder %s84, %s86
      %p93 = scmp.eq.s32.totalorder %s20, 1
      %p94 = por %p92, %p93
      %p95 = scmp.ne.s32.totalorder %s86, %s87
      %p96 = scmp.eq.s32.totalorder %s20, 0
      %p97 = por %p95, %p96
      %p98 = scmp.ne.s32.totalorder %s86, %s87
      %p99 = scmp.eq.s32.totalorder %s21, 1
      %p100 = por %p98, %p99
      %p102 = scmp.ne.s32.totalorder %s87, %s101
      %p103 = scmp.eq.s32.totalorder %s21, 0
      %p104 = por %p102, %p103
      %s106 = sadd.s32 %s105, 1
      %p109 = scmp.eq.s32.totalorder %s15, 1
      %p110 = scmp.ne.s32.totalorder %s105, %s107
      %p111 = scmp.eq.s32.totalorder %s15, 0
      %p112 = por %p110, %p111
      %p113 = scmp.ne.s32.totalorder %s105, %s107
      %p114 = scmp.eq.s32.totalorder %s20, 1
      %p115 = por %p113, %p114
      %p116 = scmp.ne.s32.totalorder %s107, %s108
      %p117 = scmp.eq.s32.totalorder %s20, 0
      %p118 = por %p116, %p117
      %p119 = scmp.ne.s32.totalorder %s107, %s108
      %p120 = scmp.eq.s32.totalorder %s21, 1
      %p121 = por %p119, %p120
      %p123 = scmp.ne.s32.totalorder %s108, %s122
      %p124 = scmp.eq.s32.totalorder %s21, 0
      %p125 = por %p123, %p124
      %s127 = sadd.s32 %s126, 1
      %p130 = scmp.eq.s32.totalorder %s15, 1
      %p131 = scmp.ne.s32.totalorder %s126, %s128
      %p132 = scmp.eq.s32.totalorder %s15, 0
      %p133 = por %p131, %p132
      %p134 = scmp.ne.s32.totalorder %s126, %s128
      %p135 = scmp.eq.s32.totalorder %s20, 1
      %p136 = por %p134, %p135
      %p137 = scmp.ne.s32.totalorder %s128, %s129
      %p138 = scmp.eq.s32.totalorder %s20, 0
      %p139 = por %p137, %p138
      %p140 = scmp.ne.s32.totalorder %s128, %s129
      %p141 = scmp.eq.s32.totalorder %s21, 1
      %p142 = por %p140, %p141
      %p144 = scmp.ne.s32.totalorder %s129, %s143
      %p145 = scmp.eq.s32.totalorder %s21, 0
      %p146 = por %p144, %p145
      %s148 = sadd.s32 %s147, 1
      %p151 = scmp.eq.s32.totalorder %s15, 1
      %p152 = scmp.ne.s32.totalorder %s147, %s149
      %p153 = scmp.eq.s32.totalorder %s15, 0
      %p154 = por %p152, %p153
      %p155 = scmp.ne.s32.totalorder %s147, %s149
      %p156 = scmp.eq.s32.totalorder %s20, 1
      %p157 = por %p155, %p156
      %p158 = scmp.ne.s32.totalorder %s149, %s150
      %p159 = scmp.eq.s32.totalorder %s20, 0
      %p160 = por %p158, %p159
      %p161 = scmp.ne.s32.totalorder %s149, %s150
      %p162 = scmp.eq.s32.totalorder %s21, 1
      %p163 = por %p161, %p162
      %p165 = scmp.ne.s32.totalorder %s150, %s164
      %p166 = scmp.eq.s32.totalorder %s21, 0
      %p167 = por %p165, %p166
      %s168 = ssub.s32 %s22, %s34
      %s169 = ssub.s32 %s23, %s30
      %s170 = sor.u32 %s168, %s169
      %p171 = scmp.eq.s32.totalorder %s170, 0
      %s173 = sadd.s32 %s172, 1
      %s174 = scalar_select %p171, %s172, %s173
      %p177 = pneg %p171
      %p178 = scmp.eq.s32.totalorder %s15, 1
      %p179 = por %p177, %p178
      %p180 = scmp.ne.s32.totalorder %s172, %s175
      %p181 = scmp.eq.s32.totalorder %s15, 0
      %p182 = por %p180, %p181
      %p183 = scmp.ne.s32.totalorder %s172, %s175
      %p184 = scmp.eq.s32.totalorder %s20, 1
      %p185 = por %p183, %p184
      %p186 = scmp.ne.s32.totalorder %s175, %s176
      %p187 = scmp.eq.s32.totalorder %s20, 0
      %p188 = por %p186, %p187
      %p189 = scmp.ne.s32.totalorder %s175, %s176
      %p190 = scmp.eq.s32.totalorder %s21, 1
      %p191 = por %p189, %p190
      %p193 = scmp.ne.s32.totalorder %s176, %s192
      %p194 = scmp.eq.s32.totalorder %s21, 0
      %p195 = por %p193, %p194
      %p196 = scmp.le.s32.totalorder 1, %s15
      %p197 = scmp.lt.s32.totalorder %s15, 3
      %p198 = pnand %p196, %p197
      %p199 = pneg %p198
      // Predicated region
      $region9: #{tpu_custom_call.1} parent=5 // pred_check
        _
      $region10: #{tpu_custom_call.1} parent=5 // pred_check_branch
        %201 = sbr.rel (%p198) target = $region12
      $region11: #{tpu_custom_call.1} parent=5 // pred_region
        %s202 = ssub.s32 %s15, 1
        // Predicated region
        $region13: #{tpu_custom_call.1} parent=11 // pred_check
          %p203 = pneg %p76
        $region14: #{tpu_custom_call.1} parent=11 // pred_check_branch
          %205 = sbr.rel (%p203) target = $region16
        $region15: #{tpu_custom_call.1} parent=11 // pred_region
          _
        $region16: #{tpu_custom_call.1} parent=11 // pred_fallthru
          _
        // Predicated region
        $region17: #{tpu_custom_call.1} parent=11 // pred_check
          %p206 = pneg %p97
        $region18: #{tpu_custom_call.1} parent=11 // pred_check_branch
          %208 = sbr.rel (%p206) target = $region20
        $region19: #{tpu_custom_call.1} parent=11 // pred_region
          _
        $region20: #{tpu_custom_call.1} parent=11 // pred_fallthru
          _
        // Predicated region
        $region21: #{tpu_custom_call.1} parent=11 // pred_check
          %p209 = pneg %p118
        $region22: #{tpu_custom_call.1} parent=11 // pred_check_branch
          %211 = sbr.rel (%p209) target = $region24
        $region23: #{tpu_custom_call.1} parent=11 // pred_region
          _
        $region24: #{tpu_custom_call.1} parent=11 // pred_fallthru
          _
        // Predicated region
        $region25: #{tpu_custom_call.1} parent=11 // pred_check
          %p212 = pneg %p139
        $region26: #{tpu_custom_call.1} parent=11 // pred_check_branch
          %214 = sbr.rel (%p212) target = $region28
        $region27: #{tpu_custom_call.1} parent=11 // pred_region
          _
        $region28: #{tpu_custom_call.1} parent=11 // pred_fallthru
          _
        // Predicated region
        $region29: #{tpu_custom_call.1} parent=11 // pred_check
          %p215 = pneg %p160
        $region30: #{tpu_custom_call.1} parent=11 // pred_check_branch
          %217 = sbr.rel (%p215) target = $region32
        $region31: #{tpu_custom_call.1} parent=11 // pred_region
          _
        $region32: #{tpu_custom_call.1} parent=11 // pred_fallthru
          _
      $region12: #{tpu_custom_call.1} parent=5 // pred_fallthru
        _
      %p218 = scmp.lt.s32.totalorder %s15, 2
      // Predicated region
      $region33: #{tpu_custom_call.1} parent=5 // pred_check
        %p219 = pneg %p218
      $region34: #{tpu_custom_call.1} parent=5 // pred_check_branch
        %221 = sbr.rel (%p219) target = $region36
      $region35: #{tpu_custom_call.1} parent=5 // pred_region
        // Predicated region
        $region37: #{tpu_custom_call.1} parent=35 // pred_check
          %p222 = pneg %p49
        $region38: #{tpu_custom_call.1} parent=35 // pred_check_branch
          %224 = sbr.rel (%p222) target = $region40
        $region39: #{tpu_custom_call.1} parent=35 // pred_region
          %p225 = scmp.lt.s32.totalorder %s22, 1
          %s226 = scalar_select %p225, %s22, 1
          %p227 = scmp.lt.s32.totalorder %s23, 0
          %s228 = scalar_select %p227, %s23, 0
          %s229 = smul.addr %s228, 3
          %s230 = smul.addr %s226, 3
          %s231 = sadd.s32 %s229, %s230
          %s232 = smul.addr %s231, 2
          %s233 = scalar_lea.vmem %s0, %s232
        $region40: #{tpu_custom_call.1} parent=35 // pred_fallthru
          _
      $region36: #{tpu_custom_call.1} parent=5 // pred_fallthru
        _
      %p234 = scmp.le.s32.totalorder 1, %s15
      %p235 = scmp.lt.s32.totalorder %s15, 3
      %p236 = pnand %p234, %p235
      %p237 = pneg %p236
      // Predicated region
      $region41: #{tpu_custom_call.1} parent=5 // pred_check
        _
      $region42: #{tpu_custom_call.1} parent=5 // pred_check_branch
        %239 = sbr.rel (%p236) target = $region44
      $region43: #{tpu_custom_call.1} parent=5 // pred_region
        %s240 = ssub.s32 %s15, 1
        %p241 = scmp.lt.s32.totalorder %s24, 1
        %s242 = scalar_select %p241, %s24, 1
        %p243 = scmp.lt.s32.totalorder %s25, 0
        %s244 = scalar_select %p243, %s25, 0
        %s245 = smul.addr %s244, 3
        %s246 = smul.addr %s242, 3
        %s247 = sadd.s32 %s245, %s246
        %s248 = smul.addr %s247, 2
        %s249 = scalar_lea.vmem %s0, %s248
        %p250 = pneg %p55
        %p251 = pneg %p52
        %p252 = pneg %p76
        %p253 = pneg %p73
        %p254 = pneg %p97
        %p255 = pneg %p94
        %p256 = pneg %p118
        %p257 = pneg %p115
        %p258 = pneg %p139
        %p259 = pneg %p136
        %p260 = pneg %p160
        %p261 = pneg %p157
        %p262 = pneg %p188
        %p263 = pneg %p185
        %s264 = sand.u32 %s175, 1
        %s265 = scalar_lea.sflag [#allocation3], %s264
        %s266 = sand.u32 %s175, 1
        %s267 = smul.addr %s266, 48
        %s268 = scalar_lea.vmem [#allocation2], %s267
        %p269 = scmp.lt.s32.totalorder %s24, 1
        %s270 = scalar_select %p269, %s24, 1
        %p271 = scmp.lt.s32.totalorder %s25, 0
        %s272 = scalar_select %p271, %s25, 0
        %s273 = smul.addr %s272, 3
        %s274 = smul.addr %s270, 3
        %s275 = sadd.s32 %s273, %s274
        %s276 = smul.addr %s275, 2
        %s277 = scalar_lea.vmem %s0, %s276
        %s278 = smul.u32 2, %s25
        %v280 = vld [vmem:[%s277] sm:$0x3f]
        %v281 = vld [vmem:[%s3] sm:$0xf]
        %v282 = vld [vmem:[%s1] sm:$0xf]
        %v285 = vunpack.c.l.s4 1983009808
        %v286 = vunpack.c.0.s8 %v285
        %v287 = vlaneseq
        %v288 = vshrl.u32 %v287, 7
        %v289 = vsub.s32 %v286, %v288
        %v290 = vrot.slane %v280, %v289
        %v291 = vcombine.high %v290, %v290
        %vm292 = vcmask 31744
        %v294 = vsel %vm292, %v282, 0
        %vm296 = vcmask 1041408
        %v298 = vsel %vm296, %v290, 0
        %v301 = vsel %vm296, %v291, 0
        %303 = vmatprep.subr.bf16.mxu0 0
        %304 = vmatpush1.bf16.msra.mxu0 0
        %305 = vmatprep.subr.bf16.mxu0 0
        %306 = vmatpush1.bf16.msra.mxu0 0
        %307 = vmatprep.subr.bf16.mxu0 0
        %308 = vmatpush1.bf16.msra.mxu0 0
        %309 = vmatprep.subr.bf16.mxu0 0
        %310 = vmatpush1.bf16.msra.mxu0 0
        %311 = vmatprep.subr.bf16.mxu0 0
        %312 = vmatpush1.bf16.msra.mxu0 0
        %313 = vmatprep.subr.bf16.mxu0 0
        %314 = vmatpush1.bf16.msra.mxu0 0
        %315 = vmatprep.subr.bf16.mxu0 0
        %316 = vmatpush1.bf16.msra.mxu0 0
        %317 = vmatprep.subr.bf16.mxu0 %v301
        %318 = vmatpush1.bf16.msra.mxu0 %v298
        %319 = vmatprep.subr.bf16.mxu0 0
        %320 = vmatpush2.bf16.msra.mxu0 0
        %321 = vmatprep.subr.bf16.mxu0 0
        %322 = vmatpush2.bf16.msra.mxu0 0
        %323 = vmatprep.subr.bf16.mxu0 0
        %324 = vmatpush2.bf16.msra.mxu0 0
        %325 = vmatprep.subr.bf16.mxu0 0
        %326 = vmatpush2.bf16.msra.mxu0 0
        %327 = vmatprep.subr.bf16.mxu0 0
        %328 = vmatpush2.bf16.msra.mxu0 0
        %329 = vmatprep.subr.bf16.mxu0 0
        %330 = vmatpush2.bf16.msra.mxu0 0
        %331 = vmatprep.subr.bf16.mxu0 0
        %332 = vmatpush2.bf16.msra.mxu0 0
        %333 = vmatprep.subr.bf16.mxu0 0
        %334 = vmatpush2.bf16.msra.mxu0 0
        %335 = vmatprep.mubr.bf16.mxu0 0
        %336 = vmatmul.mubr.bf16.gmra.mxu0 %v294
        %v337 = vpop.f32.mrf.mxu0
        %v338 = vadd.f32 0.0, %v337
        %v339 = vpop.f32.mrf.mxu0
        %v340 = vadd.f32 0.0, %v339
        %v341 = vpop.f32.mrf.mxu0
        %v342 = vpop.f32.mrf.mxu0
        %343 = vdwg.mxu0
        %v345 = vlaneseq
        %v346 = vshrl.u32 %v345, 7
        %v347 = vsub.s32 0, %v346
        %v348 = vrot.slane %v281, %v347
        %v349 = vlaneseq
        %v350 = vshrl.u32 %v349, 7
        %v351 = vsub.s32 2, %v350
        %v352 = vrot.slane %v281, %v351
        %v355 = vlaneseq
        %v356 = vshrl.u32 %v355, 7
        %v357 = vsub.s32 0, %v356
        %v358 = vrot.slane %v348, %v357
        %v359 = vlaneseq
        %v360 = vshrl.u32 %v359, 7
        %v361 = vsub.s32 0, %v360
        %v362 = vrot.slane %v352, %v361
        %v363 = vmul.f32 %v338, %v358
        %v364 = vmul.f32 %v340, %v362
        %v365 = vadd.f32 %v363, 0.0
        %v366 = vadd.f32 %v364, 0.0
        %s367 = scalar_lea.vmem %s1, 4
        %v368 = vld [vmem:[%s367] sm:$0xf]
        %v369 = vcombine.high %v280, %v280
        %v371 = vunpack.c.l.s4 1983009808
        %v372 = vunpack.c.0.s8 %v371
        %v373 = vlaneseq
        %v374 = vshrl.u32 %v373, 7
        %v375 = vsub.s32 %v372, %v374
        %v376 = vrot.slane %v369, %v375
        %377 = vrot.lane.b32.xlu0 %v290, 127
        %v378 = vpop.permute.xlu0 %377
        %379 = vrot.lane.b32.xlu0 %v291, 127
        %v380 = vpop.permute.xlu0 %379
        %381 = vrot.lane.b32.xlu0 %v376, 127
        %v382 = vpop.permute.xlu0 %381
        %vm383 = vcmask 1039360
        %v384 = vsel %vm383, %v378, %v380
        %v385 = vsel %vm383, %v380, %v382
        %v387 = vsel %vm292, %v368, 0
        %v390 = vsel %vm296, %v384, 0
        %v393 = vsel %vm296, %v385, 0
        %395 = vmatprep.subr.bf16.mxu0 0
        %396 = vmatpush1.bf16.msra.mxu0 0
        %397 = vmatprep.subr.bf16.mxu0 0
        %398 = vmatpush1.bf16.msra.mxu0 0
        %399 = vmatprep.subr.bf16.mxu0 0
        %400 = vmatpush1.bf16.msra.mxu0 0
        %401 = vmatprep.subr.bf16.mxu0 0
        %402 = vmatpush1.bf16.msra.mxu0 0
        %403 = vmatprep.subr.bf16.mxu0 0
        %404 = vmatpush1.bf16.msra.mxu0 0
        %405 = vmatprep.subr.bf16.mxu0 0
        %406 = vmatpush1.bf16.msra.mxu0 0
        %407 = vmatprep.subr.bf16.mxu0 0
        %408 = vmatpush1.bf16.msra.mxu0 0
        %409 = vmatprep.subr.bf16.mxu0 %v393
        %410 = vmatpush1.bf16.msra.mxu0 %v390
        %411 = vmatprep.subr.bf16.mxu0 0
        %412 = vmatpush2.bf16.msra.mxu0 0
        %413 = vmatprep.subr.bf16.mxu0 0
        %414 = vmatpush2.bf16.msra.mxu0 0
        %415 = vmatprep.subr.bf16.mxu0 0
        %416 = vmatpush2.bf16.msra.mxu0 0
        %417 = vmatprep.subr.bf16.mxu0 0
        %418 = vmatpush2.bf16.msra.mxu0 0
        %419 = vmatprep.subr.bf16.mxu0 0
        %420 = vmatpush2.bf16.msra.mxu0 0
        %421 = vmatprep.subr.bf16.mxu0 0
        %422 = vmatpush2.bf16.msra.mxu0 0
        %423 = vmatprep.subr.bf16.mxu0 0
        %424 = vmatpush2.bf16.msra.mxu0 0
        %425 = vmatprep.subr.bf16.mxu0 0
        %426 = vmatpush2.bf16.msra.mxu0 0
        %427 = vmatprep.mubr.bf16.mxu0 0
        %428 = vmatmul.mubr.bf16.gmra.mxu0 %v387
        %v429 = vpop.f32.mrf.mxu0
        %v430 = vadd.f32 0.0, %v429
        %v431 = vpop.f32.mrf.mxu0
        %v432 = vadd.f32 0.0, %v431
        %v433 = vpop.f32.mrf.mxu0
        %v434 = vpop.f32.mrf.mxu0
        %435 = vdwg.mxu0
        %v436 = vadd.f32 %v365, %v430
        %v437 = vadd.f32 %v366, %v432
        %s438 = scalar_lea.vmem %s1, 8
        %v439 = vld [vmem:[%s438] sm:$0xf]
        %440 = vrot.lane.b32.xlu0 %v290, 126
        %v441 = vpop.permute.xlu0 %440
        %442 = vrot.lane.b32.xlu0 %v291, 126
        %v443 = vpop.permute.xlu0 %442
        %444 = vrot.lane.b32.xlu0 %v376, 126
        %v445 = vpop.permute.xlu0 %444
        %vm446 = vcmask 1031168
        %v447 = vsel %vm446, %v441, %v443
        %v448 = vsel %vm446, %v443, %v445
        %v450 = vsel %vm292, %v439, 0
        %v453 = vsel %vm296, %v447, 0
        %v456 = vsel %vm296, %v448, 0
        %458 = vmatprep.subr.bf16.mxu0 0
        %459 = vmatpush1.bf16.msra.mxu0 0
        %460 = vmatprep.subr.bf16.mxu0 0
        %461 = vmatpush1.bf16.msra.mxu0 0
        %462 = vmatprep.subr.bf16.mxu0 0
        %463 = vmatpush1.bf16.msra.mxu0 0
        %464 = vmatprep.subr.bf16.mxu0 0
        %465 = vmatpush1.bf16.msra.mxu0 0
        %466 = vmatprep.subr.bf16.mxu0 0
        %467 = vmatpush1.bf16.msra.mxu0 0
        %468 = vmatprep.subr.bf16.mxu0 0
        %469 = vmatpush1.bf16.msra.mxu0 0
        %470 = vmatprep.subr.bf16.mxu0 0
        %471 = vmatpush1.bf16.msra.mxu0 0
        %472 = vmatprep.subr.bf16.mxu0 %v456
        %473 = vmatpush1.bf16.msra.mxu0 %v453
        %474 = vmatprep.subr.bf16.mxu0 0
        %475 = vmatpush2.bf16.msra.mxu0 0
        %476 = vmatprep.subr.bf16.mxu0 0
        %477 = vmatpush2.bf16.msra.mxu0 0
        %478 = vmatprep.subr.bf16.mxu0 0
        %479 = vmatpush2.bf16.msra.mxu0 0
        %480 = vmatprep.subr.bf16.mxu0 0
        %481 = vmatpush2.bf16.msra.mxu0 0
        %482 = vmatprep.subr.bf16.mxu0 0
        %483 = vmatpush2.bf16.msra.mxu0 0
        %484 = vmatprep.subr.bf16.mxu0 0
        %485 = vmatpush2.bf16.msra.mxu0 0
        %486 = vmatprep.subr.bf16.mxu0 0
        %487 = vmatpush2.bf16.msra.mxu0 0
        %488 = vmatprep.subr.bf16.mxu0 0
        %489 = vmatpush2.bf16.msra.mxu0 0
        %490 = vmatprep.mubr.bf16.mxu0 0
        %491 = vmatmul.mubr.bf16.gmra.mxu0 %v450
        %v492 = vpop.f32.mrf.mxu0
        %v493 = vadd.f32 0.0, %v492
        %v494 = vpop.f32.mrf.mxu0
        %v495 = vadd.f32 0.0, %v494
        %v496 = vpop.f32.mrf.mxu0
        %v497 = vpop.f32.mrf.mxu0
        %498 = vdwg.mxu0
        %v499 = vlaneseq
        %v500 = vshrl.u32 %v499, 7
        %v501 = vsub.s32 1, %v500
        %v502 = vrot.slane %v281, %v501
        %v503 = vlaneseq
        %v504 = vshrl.u32 %v503, 7
        %v505 = vsub.s32 3, %v504
        %v506 = vrot.slane %v281, %v505
        %v509 = vlaneseq
        %v510 = vshrl.u32 %v509, 7
        %v511 = vsub.s32 1, %v510
        %v512 = vrot.slane %v502, %v511
        %v513 = vlaneseq
        %v514 = vshrl.u32 %v513, 7
        %v515 = vsub.s32 1, %v514
        %v516 = vrot.slane %v506, %v515
        %v517 = vmul.f32 %v493, %v512
        %v518 = vmul.f32 %v495, %v516
        %v519 = vadd.f32 %v436, %v517
        %v520 = vadd.f32 %v437, %v518
        %s521 = scalar_lea.vmem %s1, 12
        %v522 = vld [vmem:[%s521] sm:$0xf]
        %523 = vrot.lane.b32.xlu0 %v290, 112
        %v524 = vpop.permute.xlu0 %523
        %525 = vrot.lane.b32.xlu0 %v291, 112
        %v526 = vpop.permute.xlu0 %525
        %527 = vrot.lane.b32.xlu0 %v376, 112
        %v528 = vpop.permute.xlu0 %527
        %vm529 = vcmask 916480
        %v530 = vsel %vm529, %v524, %v526
        %v531 = vsel %vm529, %v526, %v528
        %v533 = vsel %vm292, %v522, 0
        %v536 = vsel %vm296, %v530, 0
        %v539 = vsel %vm296, %v531, 0
        %541 = vmatprep.subr.bf16.mxu0 0
        %542 = vmatpush1.bf16.msra.mxu0 0
        %543 = vmatprep.subr.bf16.mxu0 0
        %544 = vmatpush1.bf16.msra.mxu0 0
        %545 = vmatprep.subr.bf16.mxu0 0
        %546 = vmatpush1.bf16.msra.mxu0 0
        %547 = vmatprep.subr.bf16.mxu0 0
        %548 = vmatpush1.bf16.msra.mxu0 0
        %549 = vmatprep.subr.bf16.mxu0 0
        %550 = vmatpush1.bf16.msra.mxu0 0
        %551 = vmatprep.subr.bf16.mxu0 0
        %552 = vmatpush1.bf16.msra.mxu0 0
        %553 = vmatprep.subr.bf16.mxu0 0
        %554 = vmatpush1.bf16.msra.mxu0 0
        %555 = vmatprep.subr.bf16.mxu0 %v539
        %556 = vmatpush1.bf16.msra.mxu0 %v536
        %557 = vmatprep.subr.bf16.mxu0 0
        %558 = vmatpush2.bf16.msra.mxu0 0
        %559 = vmatprep.subr.bf16.mxu0 0
        %560 = vmatpush2.bf16.msra.mxu0 0
        %561 = vmatprep.subr.bf16.mxu0 0
        %562 = vmatpush2.bf16.msra.mxu0 0
        %563 = vmatprep.subr.bf16.mxu0 0
        %564 = vmatpush2.bf16.msra.mxu0 0
        %565 = vmatprep.subr.bf16.mxu0 0
        %566 = vmatpush2.bf16.msra.mxu0 0
        %567 = vmatprep.subr.bf16.mxu0 0
        %568 = vmatpush2.bf16.msra.mxu0 0
        %569 = vmatprep.subr.bf16.mxu0 0
        %570 = vmatpush2.bf16.msra.mxu0 0
        %571 = vmatprep.subr.bf16.mxu0 0
        %572 = vmatpush2.bf16.msra.mxu0 0
        %573 = vmatprep.mubr.bf16.mxu0 0
        %574 = vmatmul.mubr.bf16.gmra.mxu0 %v533
        %v575 = vpop.f32.mrf.mxu0
        %v576 = vadd.f32 0.0, %v575
        %v577 = vpop.f32.mrf.mxu0
        %v578 = vadd.f32 0.0, %v577
        %v579 = vpop.f32.mrf.mxu0
        %v580 = vpop.f32.mrf.mxu0
        %581 = vdwg.mxu0
        %v582 = vmul.f32 %v576, %v358
        %v583 = vmul.f32 %v578, %v362
        %v584 = vadd.f32 %v519, %v582
        %v585 = vadd.f32 %v520, %v583
        %s586 = scalar_lea.vmem %s1, 16
        %v587 = vld [vmem:[%s586] sm:$0xf]
        %588 = vrot.lane.b32.xlu0 %v290, 111
        %v589 = vpop.permute.xlu0 %588
        %590 = vrot.lane.b32.xlu0 %v291, 111
        %v591 = vpop.permute.xlu0 %590
        %592 = vrot.lane.b32.xlu0 %v376, 111
        %v593 = vpop.permute.xlu0 %592
        %vm594 = vcmask 908288
        %v595 = vsel %vm594, %v589, %v591
        %v596 = vsel %vm594, %v591, %v593
        %v598 = vsel %vm292, %v587, 0
        %v601 = vsel %vm296, %v595, 0
        %v604 = vsel %vm296, %v596, 0
        %606 = vmatprep.subr.bf16.mxu0 0
        %607 = vmatpush1.bf16.msra.mxu0 0
        %608 = vmatprep.subr.bf16.mxu0 0
        %609 = vmatpush1.bf16.msra.mxu0 0
        %610 = vmatprep.subr.bf16.mxu0 0
        %611 = vmatpush1.bf16.msra.mxu0 0
        %612 = vmatprep.subr.bf16.mxu0 0
        %613 = vmatpush1.bf16.msra.mxu0 0
        %614 = vmatprep.subr.bf16.mxu0 0
        %615 = vmatpush1.bf16.msra.mxu0 0
        %616 = vmatprep.subr.bf16.mxu0 0
        %617 = vmatpush1.bf16.msra.mxu0 0
        %618 = vmatprep.subr.bf16.mxu0 0
        %619 = vmatpush1.bf16.msra.mxu0 0
        %620 = vmatprep.subr.bf16.mxu0 %v604
        %621 = vmatpush1.bf16.msra.mxu0 %v601
        %622 = vmatprep.subr.bf16.mxu0 0
        %623 = vmatpush2.bf16.msra.mxu0 0
        %624 = vmatprep.subr.bf16.mxu0 0
        %625 = vmatpush2.bf16.msra.mxu0 0
        %626 = vmatprep.subr.bf16.mxu0 0
        %627 = vmatpush2.bf16.msra.mxu0 0
        %628 = vmatprep.subr.bf16.mxu0 0
        %629 = vmatpush2.bf16.msra.mxu0 0
        %630 = vmatprep.subr.bf16.mxu0 0
        %631 = vmatpush2.bf16.msra.mxu0 0
        %632 = vmatprep.subr.bf16.mxu0 0
        %633 = vmatpush2.bf16.msra.mxu0 0
        %634 = vmatprep.subr.bf16.mxu0 0
        %635 = vmatpush2.bf16.msra.mxu0 0
        %636 = vmatprep.subr.bf16.mxu0 0
        %637 = vmatpush2.bf16.msra.mxu0 0
        %638 = vmatprep.mubr.bf16.mxu0 0
        %639 = vmatmul.mubr.bf16.gmra.mxu0 %v598
        %v640 = vpop.f32.mrf.mxu0
        %v641 = vadd.f32 0.0, %v640
        %v642 = vpop.f32.mrf.mxu0
        %v643 = vadd.f32 0.0, %v642
        %v644 = vpop.f32.mrf.mxu0
        %v645 = vpop.f32.mrf.mxu0
        %646 = vdwg.mxu0
        %v647 = vadd.f32 %v584, %v641
        %v648 = vadd.f32 %v585, %v643
        %s649 = scalar_lea.vmem %s1, 20
        %v650 = vld [vmem:[%s649] sm:$0xf]
        %651 = vrot.lane.b32.xlu0 %v290, 110
        %v652 = vpop.permute.xlu0 %651
        %653 = vrot.lane.b32.xlu0 %v291, 110
        %v654 = vpop.permute.xlu0 %653
        %655 = vrot.lane.b32.xlu0 %v376, 110
        %v656 = vpop.permute.xlu0 %655
        %vm657 = vcmask 900096
        %v658 = vsel %vm657, %v652, %v654
        %v659 = vsel %vm657, %v654, %v656
        %v661 = vsel %vm292, %v650, 0
        %v664 = vsel %vm296, %v658, 0
        %v667 = vsel %vm296, %v659, 0
        %669 = vmatprep.subr.bf16.mxu0 0
        %670 = vmatpush1.bf16.msra.mxu0 0
        %671 = vmatprep.subr.bf16.mxu0 0
        %672 = vmatpush1.bf16.msra.mxu0 0
        %673 = vmatprep.subr.bf16.mxu0 0
        %674 = vmatpush1.bf16.msra.mxu0 0
        %675 = vmatprep.subr.bf16.mxu0 0
        %676 = vmatpush1.bf16.msra.mxu0 0
        %677 = vmatprep.subr.bf16.mxu0 0
        %678 = vmatpush1.bf16.msra.mxu0 0
        %679 = vmatprep.subr.bf16.mxu0 0
        %680 = vmatpush1.bf16.msra.mxu0 0
        %681 = vmatprep.subr.bf16.mxu0 0
        %682 = vmatpush1.bf16.msra.mxu0 0
        %683 = vmatprep.subr.bf16.mxu0 %v667
        %684 = vmatpush1.bf16.msra.mxu0 %v664
        %685 = vmatprep.subr.bf16.mxu0 0
        %686 = vmatpush2.bf16.msra.mxu0 0
        %687 = vmatprep.subr.bf16.mxu0 0
        %688 = vmatpush2.bf16.msra.mxu0 0
        %689 = vmatprep.subr.bf16.mxu0 0
        %690 = vmatpush2.bf16.msra.mxu0 0
        %691 = vmatprep.subr.bf16.mxu0 0
        %692 = vmatpush2.bf16.msra.mxu0 0
        %693 = vmatprep.subr.bf16.mxu0 0
        %694 = vmatpush2.bf16.msra.mxu0 0
        %695 = vmatprep.subr.bf16.mxu0 0
        %696 = vmatpush2.bf16.msra.mxu0 0
        %697 = vmatprep.subr.bf16.mxu0 0
        %698 = vmatpush2.bf16.msra.mxu0 0
        %699 = vmatprep.subr.bf16.mxu0 0
        %700 = vmatpush2.bf16.msra.mxu0 0
        %701 = vmatprep.mubr.bf16.mxu0 0
        %702 = vmatmul.mubr.bf16.gmra.mxu0 %v661
        %v703 = vpop.f32.mrf.mxu0
        %v704 = vadd.f32 0.0, %v703
        %v705 = vpop.f32.mrf.mxu0
        %v706 = vadd.f32 0.0, %v705
        %v707 = vpop.f32.mrf.mxu0
        %v708 = vpop.f32.mrf.mxu0
        %709 = vdwg.mxu0
        %v710 = vmul.f32 %v704, %v512
        %v711 = vmul.f32 %v706, %v516
        %v712 = vadd.f32 %v647, %v710
        %v713 = vadd.f32 %v648, %v711
        %s714 = scalar_lea.vmem %s1, 24
        %v715 = vld [vmem:[%s714] sm:$0xf]
        %716 = vrot.lane.b32.xlu0 %v290, 96
        %v717 = vpop.permute.xlu0 %716
        %718 = vrot.lane.b32.xlu0 %v291, 96
        %v719 = vpop.permute.xlu0 %718
        %720 = vrot.lane.b32.xlu0 %v376, 96
        %v721 = vpop.permute.xlu0 %720
        %vm722 = vcmask 785408
        %v723 = vsel %vm722, %v717, %v719
        %v724 = vsel %vm722, %v719, %v721
        %v726 = vsel %vm292, %v715, 0
        %v729 = vsel %vm296, %v723, 0
        %v732 = vsel %vm296, %v724, 0
        %734 = vmatprep.subr.bf16.mxu0 0
        %735 = vmatpush1.bf16.msra.mxu0 0
        %736 = vmatprep.subr.bf16.mxu0 0
        %737 = vmatpush1.bf16.msra.mxu0 0
        %738 = vmatprep.subr.bf16.mxu0 0
        %739 = vmatpush1.bf16.msra.mxu0 0
        %740 = vmatprep.subr.bf16.mxu0 0
        %741 = vmatpush1.bf16.msra.mxu0 0
        %742 = vmatprep.subr.bf16.mxu0 0
        %743 = vmatpush1.bf16.msra.mxu0 0
        %744 = vmatprep.subr.bf16.mxu0 0
        %745 = vmatpush1.bf16.msra.mxu0 0
        %746 = vmatprep.subr.bf16.mxu0 0
        %747 = vmatpush1.bf16.msra.mxu0 0
        %748 = vmatprep.subr.bf16.mxu0 %v732
        %749 = vmatpush1.bf16.msra.mxu0 %v729
        %750 = vmatprep.subr.bf16.mxu0 0
        %751 = vmatpush2.bf16.msra.mxu0 0
        %752 = vmatprep.subr.bf16.mxu0 0
        %753 = vmatpush2.bf16.msra.mxu0 0
        %754 = vmatprep.subr.bf16.mxu0 0
        %755 = vmatpush2.bf16.msra.mxu0 0
        %756 = vmatprep.subr.bf16.mxu0 0
        %757 = vmatpush2.bf16.msra.mxu0 0
        %758 = vmatprep.subr.bf16.mxu0 0
        %759 = vmatpush2.bf16.msra.mxu0 0
        %760 = vmatprep.subr.bf16.mxu0 0
        %761 = vmatpush2.bf16.msra.mxu0 0
        %762 = vmatprep.subr.bf16.mxu0 0
        %763 = vmatpush2.bf16.msra.mxu0 0
        %764 = vmatprep.subr.bf16.mxu0 0
        %765 = vmatpush2.bf16.msra.mxu0 0
        %766 = vmatprep.mubr.bf16.mxu0 0
        %767 = vmatmul.mubr.bf16.gmra.mxu0 %v726
        %v768 = vpop.f32.mrf.mxu0
        %v769 = vadd.f32 0.0, %v768
        %v770 = vpop.f32.mrf.mxu0
        %v771 = vadd.f32 0.0, %v770
        %v772 = vpop.f32.mrf.mxu0
        %v773 = vpop.f32.mrf.mxu0
        %774 = vdwg.mxu0
        %v775 = vmul.f32 %v769, %v358
        %v776 = vmul.f32 %v771, %v362
        %v777 = vadd.f32 %v712, %v775
        %v778 = vadd.f32 %v713, %v776
        %s779 = scalar_lea.vmem %s1, 28
        %v780 = vld [vmem:[%s779] sm:$0xf]
        %781 = vrot.lane.b32.xlu0 %v290, 95
        %v782 = vpop.permute.xlu0 %781
        %783 = vrot.lane.b32.xlu0 %v291, 95
        %v784 = vpop.permute.xlu0 %783
        %785 = vrot.lane.b32.xlu0 %v376, 95
        %v786 = vpop.permute.xlu0 %785
        %vm787 = vcmask 777216
        %v788 = vsel %vm787, %v782, %v784
        %v789 = vsel %vm787, %v784, %v786
        %v791 = vsel %vm292, %v780, 0
        %v794 = vsel %vm296, %v788, 0
        %v797 = vsel %vm296, %v789, 0
        %799 = vmatprep.subr.bf16.mxu0 0
        %800 = vmatpush1.bf16.msra.mxu0 0
        %801 = vmatprep.subr.bf16.mxu0 0
        %802 = vmatpush1.bf16.msra.mxu0 0
        %803 = vmatprep.subr.bf16.mxu0 0
        %804 = vmatpush1.bf16.msra.mxu0 0
        %805 = vmatprep.subr.bf16.mxu0 0
        %806 = vmatpush1.bf16.msra.mxu0 0
        %807 = vmatprep.subr.bf16.mxu0 0
        %808 = vmatpush1.bf16.msra.mxu0 0
        %809 = vmatprep.subr.bf16.mxu0 0
        %810 = vmatpush1.bf16.msra.mxu0 0
        %811 = vmatprep.subr.bf16.mxu0 0
        %812 = vmatpush1.bf16.msra.mxu0 0
        %813 = vmatprep.subr.bf16.mxu0 %v797
        %814 = vmatpush1.bf16.msra.mxu0 %v794
        %815 = vmatprep.subr.bf16.mxu0 0
        %816 = vmatpush2.bf16.msra.mxu0 0
        %817 = vmatprep.subr.bf16.mxu0 0
        %818 = vmatpush2.bf16.msra.mxu0 0
        %819 = vmatprep.subr.bf16.mxu0 0
        %820 = vmatpush2.bf16.msra.mxu0 0
        %821 = vmatprep.subr.bf16.mxu0 0
        %822 = vmatpush2.bf16.msra.mxu0 0
        %823 = vmatprep.subr.bf16.mxu0 0
        %824 = vmatpush2.bf16.msra.mxu0 0
        %825 = vmatprep.subr.bf16.mxu0 0
        %826 = vmatpush2.bf16.msra.mxu0 0
        %827 = vmatprep.subr.bf16.mxu0 0
        %828 = vmatpush2.bf16.msra.mxu0 0
        %829 = vmatprep.subr.bf16.mxu0 0
        %830 = vmatpush2.bf16.msra.mxu0 0
        %831 = vmatprep.mubr.bf16.mxu0 0
        %832 = vmatmul.mubr.bf16.gmra.mxu0 %v791
        %v833 = vpop.f32.mrf.mxu0
        %v834 = vadd.f32 0.0, %v833
        %v835 = vpop.f32.mrf.mxu0
        %v836 = vadd.f32 0.0, %v835
        %v837 = vpop.f32.mrf.mxu0
        %v838 = vpop.f32.mrf.mxu0
        %839 = vdwg.mxu0
        %v840 = vadd.f32 %v777, %v834
        %v841 = vadd.f32 %v778, %v836
        %s842 = scalar_lea.vmem %s1, 32
        %v843 = vld [vmem:[%s842] sm:$0xf]
        %844 = vrot.lane.b32.xlu0 %v290, 94
        %v845 = vpop.permute.xlu0 %844
        %846 = vrot.lane.b32.xlu0 %v291, 94
        %v847 = vpop.permute.xlu0 %846
        %848 = vrot.lane.b32.xlu0 %v376, 94
        %v849 = vpop.permute.xlu0 %848
        %vm850 = vcmask 769024
        %v851 = vsel %vm850, %v845, %v847
        %v852 = vsel %vm850, %v847, %v849
        %v854 = vsel %vm292, %v843, 0
        %v857 = vsel %vm296, %v851, 0
        %v860 = vsel %vm296, %v852, 0
        %862 = vmatprep.subr.bf16.mxu0 0
        %863 = vmatpush1.bf16.msra.mxu0 0
        %864 = vmatprep.subr.bf16.mxu0 0
        %865 = vmatpush1.bf16.msra.mxu0 0
        %866 = vmatprep.subr.bf16.mxu0 0
        %867 = vmatpush1.bf16.msra.mxu0 0
        %868 = vmatprep.subr.bf16.mxu0 0
        %869 = vmatpush1.bf16.msra.mxu0 0
        %870 = vmatprep.subr.bf16.mxu0 0
        %871 = vmatpush1.bf16.msra.mxu0 0
        %872 = vmatprep.subr.bf16.mxu0 0
        %873 = vmatpush1.bf16.msra.mxu0 0
        %874 = vmatprep.subr.bf16.mxu0 0
        %875 = vmatpush1.bf16.msra.mxu0 0
        %876 = vmatprep.subr.bf16.mxu0 %v860
        %877 = vmatpush1.bf16.msra.mxu0 %v857
        %878 = vmatprep.subr.bf16.mxu0 0
        %879 = vmatpush2.bf16.msra.mxu0 0
        %880 = vmatprep.subr.bf16.mxu0 0
        %881 = vmatpush2.bf16.msra.mxu0 0
        %882 = vmatprep.subr.bf16.mxu0 0
        %883 = vmatpush2.bf16.msra.mxu0 0
        %884 = vmatprep.subr.bf16.mxu0 0
        %885 = vmatpush2.bf16.msra.mxu0 0
        %886 = vmatprep.subr.bf16.mxu0 0
        %887 = vmatpush2.bf16.msra.mxu0 0
        %888 = vmatprep.subr.bf16.mxu0 0
        %889 = vmatpush2.bf16.msra.mxu0 0
        %890 = vmatprep.subr.bf16.mxu0 0
        %891 = vmatpush2.bf16.msra.mxu0 0
        %892 = vmatprep.subr.bf16.mxu0 0
        %893 = vmatpush2.bf16.msra.mxu0 0
        %894 = vmatprep.mubr.bf16.mxu0 0
        %895 = vmatmul.mubr.bf16.gmra.mxu0 %v854
        %v896 = vpop.f32.mrf.mxu0
        %v897 = vadd.f32 0.0, %v896
        %v898 = vpop.f32.mrf.mxu0
        %v899 = vadd.f32 0.0, %v898
        %v900 = vpop.f32.mrf.mxu0
        %v901 = vpop.f32.mrf.mxu0
        %902 = vdwg.mxu0
        %v903 = vmul.f32 %v897, %v512
        %v904 = vmul.f32 %v899, %v516
        %v905 = vadd.f32 %v840, %v903
        %v906 = vadd.f32 %v841, %v904
        %v907 = vld [vmem:[%s2] sm:$0xff]
        %909 = vset.pattern.permute.xlu0 0
        %910 = vperm.xlu0 %909, %v907
        %v911 = vpop.permute.xlu0 %910
        %v913 = vadd.f32 %v905, %v911
        %v914 = vadd.f32 %v906, %v911
        %vm915 = vcmp.gt.f32.partialorder %v913, 0.0
        %vm916 = vcmp.gt.f32.partialorder %v914, 0.0
        %v917 = vmul.f32 %v913, 0.01
        %v918 = vmul.f32 %v914, 0.01
        %v919 = vsel %vm915, %v913, %v917
        %v920 = vsel %vm916, %v914, %v918
        %v921 = vld [vmem:[%s4] sm:$0xf]
        %v922 = vld [vmem:[%s4 + $0x4] sm:$0xf]
        %v923 = vld [vmem:[%s4 + $0x8] sm:$0xf]
        %v924 = vpack.c.bf16 %v919, %v919
        %v925 = vpack.c.bf16 %v920, %v920
        %v926 = vld [vmem:[%s5] sm:$0xff]
        %v927 = vld [vmem:[%s5 + $0x8] sm:$0xff]
        %v928 = vld [vmem:[%s5 + $0x10] sm:$0xff]
        %930 = vset.pattern.permute.xlu0 0
        %931 = vperm.xlu0 %930, %v926
        %v932 = vpop.permute.xlu0 %931
        %935 = vset.pattern.permute.xlu0 0
        %936 = vperm.xlu0 %935, %v927
        %v937 = vpop.permute.xlu0 %936
        %940 = vset.pattern.permute.xlu0 0
        %941 = vperm.xlu0 %940, %v928
        %v942 = vpop.permute.xlu0 %941
        %v947 = vunpack.c.l.b16 %v921
        %v948 = vunpack.c.l.b16 %v922
        %v949 = vunpack.c.l.b16 %v923
        %v950 = vpack.c.b16 %v948, %v947
        %v951 = vpack.c.b16 %v949, %v949
        %vm952 = vcmask 64512
        %v954 = vsel %vm952, %v950, 0
        %v957 = vsel %vm952, %v951, 0
        %vm959 = vcmask 1043456
        %v961 = vsel %vm959, %v924, 0
        %v964 = vsel %vm959, %v925, 0
        %966 = vmatprep.subr.bf16.mxu0 0
        %967 = vmatpush1.bf16.msra.mxu0 0
        %968 = vmatprep.subr.bf16.mxu0 0
        %969 = vmatpush1.bf16.msra.mxu0 0
        %970 = vmatprep.subr.bf16.mxu0 0
        %971 = vmatpush1.bf16.msra.mxu0 0
        %972 = vmatprep.subr.bf16.mxu0 0
        %973 = vmatpush1.bf16.msra.mxu0 0
        %974 = vmatprep.subr.bf16.mxu0 0
        %975 = vmatpush1.bf16.msra.mxu0 0
        %976 = vmatprep.subr.bf16.mxu0 0
        %977 = vmatpush1.bf16.msra.mxu0 0
        %978 = vmatprep.subr.bf16.mxu0 0
        %979 = vmatpush1.bf16.msra.mxu0 0
        %980 = vmatprep.subr.bf16.mxu0 %v964
        %981 = vmatpush1.bf16.msra.mxu0 %v961
        %982 = vmatprep.subr.bf16.mxu0 0
        %983 = vmatpush2.bf16.msra.mxu0 0
        %984 = vmatprep.subr.bf16.mxu0 0
        %985 = vmatpush2.bf16.msra.mxu0 0
        %986 = vmatprep.subr.bf16.mxu0 0
        %987 = vmatpush2.bf16.msra.mxu0 0
        %988 = vmatprep.subr.bf16.mxu0 0
        %989 = vmatpush2.bf16.msra.mxu0 0
        %990 = vmatprep.subr.bf16.mxu0 0
        %991 = vmatpush2.bf16.msra.mxu0 0
        %992 = vmatprep.subr.bf16.mxu0 0
        %993 = vmatpush2.bf16.msra.mxu0 0
        %994 = vmatprep.subr.bf16.mxu0 0
        %995 = vmatpush2.bf16.msra.mxu0 0
        %996 = vmatprep.subr.bf16.mxu0 0
        %997 = vmatpush2.bf16.msra.mxu0 0
        %998 = vmatprep.mubr.bf16.mxu0 0
        %999 = vmatmul.mubr.bf16.gmra.mxu0 %v954
        %v1000 = vpop.f32.mrf.mxu0
        %v1001 = vadd.f32 %v932, %v1000
        %v1002 = vpop.f32.mrf.mxu0
        %v1003 = vadd.f32 %v932, %v1002
        %v1004 = vpop.f32.mrf.mxu0
        %v1005 = vadd.f32 %v937, %v1004
        %v1006 = vpop.f32.mrf.mxu0
        %v1007 = vadd.f32 %v937, %v1006
        %1008 = vmatprep.mubr.bf16.mxu0 0
        %1009 = vmatmul.mubr.bf16.gmra.mxu0 %v957
        %v1010 = vpop.f32.mrf.mxu0
        %v1011 = vadd.f32 %v942, %v1010
        %v1012 = vpop.f32.mrf.mxu0
        %v1013 = vadd.f32 %v942, %v1012
        %v1014 = vpop.f32.mrf.mxu0
        %v1015 = vpop.f32.mrf.mxu0
        %1016 = vdwg.mxu0
        %1017 = vst [vmem:[%s268] sm:$0xff] %v1001
        %1018 = vst [vmem:[%s268 + $0x8] sm:$0xff] %v1003
        %1019 = vst [vmem:[%s268 + $0x10] sm:$0xff] %v1005
        %1020 = vst [vmem:[%s268 + $0x18] sm:$0xff] %v1007
        %1021 = vst [vmem:[%s268 + $0x20] sm:$0xff] %v1011
        %1022 = vst [vmem:[%s268 + $0x28] sm:$0xff] %v1013
        %s1023 = sand.u32 %s175, 1
        %s1024 = scalar_lea.sflag [#allocation3], %s1023
        %s1025 = sand.u32 %s175, 1
        %s1026 = smul.addr %s1025, 48
        %s1027 = scalar_lea.vmem [#allocation2], %s1026
        // Predicated region
        $region45: #{tpu_custom_call.1} parent=43 // pred_check
          %p1028 = pneg %p185
        $region46: #{tpu_custom_call.1} parent=43 // pred_check_branch
          %1030 = sbr.rel (%p1028) target = $region48
        $region47: #{tpu_custom_call.1} parent=43 // pred_region
          %s1031 = smul.u32 2, %s25
          %s1033 = ssub.s32 768, 768
          %1034 = vsyncadd %s1024, %s1033
          %s1035 = smul.addr %s24, 6
          %s1036 = sadd.s32 %s1031, %s1035
          %s1037 = smul.addr %s1036, 128
          %s1038 = scalar_lea.hbm %s6, %s1037
          %s1039 = sshll.u32 %s1027, 4
          %s1040 = int_to_ptr.vmem [resolvable:$true] %s1039
          %1045 = dma.vmem_to_hbm [thread:$0]  %s1040, 768, %s1038, %s1024, 256, 256, 16
        $region48: #{tpu_custom_call.1} parent=43 // pred_fallthru
          _
      $region44: #{tpu_custom_call.1} parent=5 // pred_fallthru
        _
      %p1046 = scmp.le.s32.totalorder 2, %s15
      // Predicated region
      $region49: #{tpu_custom_call.1} parent=5 // pred_check
        %p1047 = pneg %p1046
      $region50: #{tpu_custom_call.1} parent=5 // pred_check_branch
        %1049 = sbr.rel (%p1047) target = $region52
      $region51: #{tpu_custom_call.1} parent=5 // pred_region
        %s1050 = ssub.s32 %s15, 2
        // Predicated region
        $region53: #{tpu_custom_call.1} parent=51 // pred_check
          %p1051 = pneg %p191
        $region54: #{tpu_custom_call.1} parent=51 // pred_check_branch
          %1053 = sbr.rel (%p1051) target = $region56
        $region55: #{tpu_custom_call.1} parent=51 // pred_region
          %s1054 = sand.u32 %s176, 1
          %s1055 = scalar_lea.sflag [#allocation3], %s1054
          %s1056 = sand.u32 %s176, 1
          %s1057 = smul.addr %s1056, 48
          %s1058 = scalar_lea.vmem [#allocation2], %s1057
          %1059 = dma.done %s1055, 768
        $region56: #{tpu_custom_call.1} parent=51 // pred_fallthru
          _
      $region52: #{tpu_custom_call.1} parent=5 // pred_fallthru
        _
    $region6: #{tpu_custom_call.1} parent=1 // loop_footer
      %s19 = sadd.s32 1, %s15
    $region7: #{tpu_custom_call.1} parent=1 // loop_footer_branch
      %14 = sbr.rel target = $region3
    $region8: #{tpu_custom_call.1} parent=1 // loop_exit
      _
    %1060 = vsyncpa [#allocation3], 1
    %s1061 = scalar_lea.sflag [#allocation3], 1
    %1062 = vsyncpa %s1061, 1

</llo_original>
